<compile_context>
chip_gen: v7x
topology: tpu7x:2x2x1
jax: 0.10.0
libtpu: 0.0.40
codegen_flags: <defaults>
</compile_context>

<pallas_src>
import numpy as np
import jax
import jax.numpy as jnp
from jax.experimental import pallas as pl
from jax.experimental.pallas import tpu as pltpu

# ---- problem sizes (small, consistent with the module's cfg fields) ----
BATCH = 2          # cfg['data']['batch_size']
N_NODES = 8        # cfg['model']['num_nodes']
UNITS = 32         # cfg['model']['rnn_units']
IN_DIM = 2         # cfg['model']['input_dim']
OUT_DIM = 2        # cfg['model']['output_dim']
N_REL = 3          # cfg['model']['num_relations']
HORIZON = 4        # cfg['model']['horizon'] == x sequence length
Y_LEN = 4          # y sequence length
BN = BATCH * N_NODES   # batch folded into the node/tile dimension


def _seq_kernel(dt_ref, h0_ref, xru_ref, xc_ref, A_ref,
                Wcat_ref, Wru_ref, Wch_ref,
                h_out_ref, h_scr):
    """One grid step = one ODE-RNN timestep; h carried in VMEM scratch.

    GODEFunc (relational graph conv) euler step, then GRU update with the
    precomputed observation projections, then store the hidden tile.
    """
    t = pl.program_id(0)

    @pl.when(t == 0)
    def _():
        h_scr[...] = h0_ref[...]

    h = h_scr[...]                               # (BN, U) f32
    dt = dt_ref[t]                               # f32 scalar from SMEM

    # ---- GODEFunc: dh/dt = tanh( h @ W0 + sum_r (A_r @ h) @ W_r ) ----
    # Fused: [h | A0h | A1h | A2h] (16,128) @ [W0; W1; W2; W3] (128,32).
    a0 = jnp.dot(A_ref[0], h, preferred_element_type=jnp.float32)
    a1 = jnp.dot(A_ref[1], h, preferred_element_type=jnp.float32)
    a2 = jnp.dot(A_ref[2], h, preferred_element_type=jnp.float32)
    h_cat = jnp.concatenate([h, a0, a1, a2], axis=-1)        # (BN, 4U)
    msg = jnp.dot(h_cat, Wcat_ref[...], preferred_element_type=jnp.float32)
    h_ode = h + dt * jnp.tanh(msg)               # explicit euler step

    # ---- GRU update (x-side projections precomputed outside the loop) ----
    gates = jax.nn.sigmoid(
        jnp.dot(h_ode, Wru_ref[...], preferred_element_type=jnp.float32)
        + xru_ref[0])                            # (BN, 2U): [reset | update]
    r_g = gates[:, :UNITS]
    u_g = gates[:, UNITS:]
    cand = jnp.tanh(
        jnp.dot(h_ode * r_g, Wch_ref[...], preferred_element_type=jnp.float32)
        + xc_ref[0])
    h_new = u_g * h_ode + (1.0 - u_g) * cand

    h_scr[...] = h_new
    h_out_ref[0] = h_new


def run_sequence(h0, x_seq, dts, fp):
    """Run the fused ODE-RNN recurrence over a whole sequence.

    h0:    [BN, U]           initial latent state
    x_seq: [T, BN, IN_DIM]   observations (already flattened over batch)
    dts:   [T] f32           per-step integration intervals
    fp:    fused parameter dict (see fuse_params)
    returns h_all: [T, BN, U]
    """
    T = x_seq.shape[0]

    # Hoist the h-independent (K=2) observation projections out of the
    # recurrence: one XLA matmul for all timesteps.
    xru = jnp.einsum("tnd,de->tne", x_seq, fp["Wx_ru"]) + fp["b_ru"]   # (T,BN,2U)
    xc = jnp.einsum("tnd,de->tne", x_seq, fp["Wx_c"]) + fp["b_c"]      # (T,BN,U)
    dts = jnp.asarray(dts, jnp.float32)

    grid_spec = pltpu.PrefetchScalarGridSpec(
        num_scalar_prefetch=0,
        grid=(T,),
        in_specs=[
            pl.BlockSpec(memory_space=pltpu.MemorySpace.SMEM),        # dt (T,)
            pl.BlockSpec((BN, UNITS), lambda t: (0, 0)),              # h0
            pl.BlockSpec((1, BN, 2 * UNITS), lambda t: (t, 0, 0)),    # x@[Wrx|Wux]+b
            pl.BlockSpec((1, BN, UNITS), lambda t: (t, 0, 0)),        # x@Wcx+bc
            pl.BlockSpec((N_REL, BN, BN), lambda t: (0, 0, 0)),       # A (block-diag)
            pl.BlockSpec((4 * UNITS, UNITS), lambda t: (0, 0)),       # [W0;Wr0;Wr1;Wr2]
            pl.BlockSpec((UNITS, 2 * UNITS), lambda t: (0, 0)),       # [Wrh|Wuh]
            pl.BlockSpec((UNITS, UNITS), lambda t: (0, 0)),           # Wch
        ],
        out_specs=pl.BlockSpec((1, BN, UNITS), lambda t: (t, 0, 0)),
        scratch_shapes=[pltpu.VMEM((BN, UNITS), jnp.float32)],        # h carry
    )
    return pl.pallas_call(
        _seq_kernel,
        out_shape=jax.ShapeDtypeStruct((T, BN, UNITS), jnp.float32),
        grid_spec=grid_spec,
        # Time axis carries h -> must stay "arbitrary".  Batch is folded into
        # the tile, so there is no batch axis to mark "parallel" (v7x).
        compiler_params=pltpu.CompilerParams(
            dimension_semantics=("arbitrary",)),
    )(dts, h0, xru, xc, fp["A_bd"], fp["Wcat"], fp["Wru"], fp["Wch"])


def init_params(key):
    ks = jax.random.split(key, 12)

    def w(k, shape, scale):
        return (scale * jax.random.normal(k, shape)).astype(jnp.float32)

    # synthetic relational adjacency (row-normalized), stands in for
    # (edge_index, edge_attr) of the RGCN-style GODEFunc.
    adj = jax.random.uniform(ks[0], (N_REL, N_NODES, N_NODES), jnp.float32)
    adj = adj / jnp.sum(adj, axis=-1, keepdims=True)

    su = 1.0 / np.sqrt(UNITS)
    si = 1.0 / np.sqrt(IN_DIM)
    return dict(
        A=adj,
        Wrel=w(ks[1], (N_REL, UNITS, UNITS), su),
        W0=w(ks[2], (UNITS, UNITS), su),
        Wrh=w(ks[3], (UNITS, UNITS), su),
        Wrx=w(ks[4], (IN_DIM, UNITS), si),
        br=jnp.zeros((1, UNITS), jnp.float32),
        Wuh=w(ks[5], (UNITS, UNITS), su),
        Wux=w(ks[6], (IN_DIM, UNITS), si),
        bu=jnp.zeros((1, UNITS), jnp.float32),
        Wch=w(ks[7], (UNITS, UNITS), su),
        Wcx=w(ks[8], (IN_DIM, UNITS), si),
        bc=jnp.zeros((1, UNITS), jnp.float32),
        Wout=w(ks[9], (UNITS, OUT_DIM), su),
        bout=jnp.zeros((1, OUT_DIM), jnp.float32),
        Wz0=w(ks[10], (UNITS, UNITS), su),
        bz0=jnp.zeros((UNITS,), jnp.float32),
    )


def fuse_params(p):
    """Host-side weight fusions feeding the kernel's 128-aligned matmuls."""
    eye_b = jnp.eye(BATCH, dtype=jnp.float32)
    # block-diagonal adjacency (batch folded into the node axis)
    A_bd = jnp.stack([jnp.kron(eye_b, p["A"][r]) for r in range(N_REL)], axis=0)
    return dict(
        A_bd=A_bd,                                                      # (R,BN,BN)
        Wcat=jnp.concatenate(
            [p["W0"], p["Wrel"][0], p["Wrel"][1], p["Wrel"][2]], axis=0),  # (4U,U)
        Wru=jnp.concatenate([p["Wrh"], p["Wuh"]], axis=1),              # (U,2U)
        Wch=p["Wch"],                                                   # (U,U)
        Wx_ru=jnp.concatenate([p["Wrx"], p["Wux"]], axis=1),            # (D,2U)
        b_ru=jnp.concatenate([p["br"], p["bu"]], axis=-1),              # (1,2U)
        Wx_c=p["Wcx"],                                                  # (D,U)
        b_c=p["bc"],                                                    # (1,U)
    )


def str_godes_forward(params, x_input, y_input, x_times, y_times):
    """Mirrors STR_GODEs.forward.

    x_input/y_input: [T, B, N, D]; x_times/y_times: numpy [T, 1].
    Returns [B, T_keep, N, OUT_DIM] (predictions.transpose(0, 1)).
    """
    fp = fuse_params(params)
    Tx = x_input.shape[0]

    # ---- encoder_z0 (ODE-RNN, run_backwards=True) ----
    x_enc = jnp.flip(x_input, axis=0).reshape(Tx, BN, IN_DIM)
    xt = np.asarray(x_times[:, 0], np.float64)
    rev_t = xt[::-1]
    dts_enc = np.abs(np.concatenate([[0.0], np.diff(rev_t)])).astype(np.float32)
    h0 = jnp.zeros((BN, UNITS), jnp.float32)
    h_all_enc = run_sequence(h0, x_enc, dts_enc, fp)
    hidden = h_all_enc[-1]                                   # (BN, U)

    # TODO(synk): Encoder_z0_ODE_RNN's variational (mean/std + sampling) head
    # is replaced by a deterministic linear transform of the final hidden.
    z0 = jnp.tanh(jnp.dot(hidden, params["Wz0"]) + params["bz0"])

    # ---- DiffeqSolver_prediction over concat(x, y) times ----
    # TODO(synk): the adaptive 'dopri5' solver is approximated by fixed-step
    # explicit euler between consecutive observation times.
    data = jnp.concatenate([x_input, y_input], axis=0).reshape(-1, BN, IN_DIM)
    times = np.concatenate([np.asarray(x_times), np.asarray(y_times)], axis=0)
    tt = times[:, 0].astype(np.float64)
    dts_dec = np.concatenate([[0.0], np.diff(tt)]).astype(np.float32)
    h_all_dec = run_sequence(z0, data, dts_dec, fp)          # (T, BN, U)

    # ---- torch.sort(times) + keep predictions with id_times >= horizon ----
    id_times = np.argsort(times[:, 0], kind="stable")
    keep = np.asarray(
        [t for t in range(times.shape[0]) if int(id_times[t]) >= HORIZON])
    h_keep = h_all_dec[keep]                                 # (Tk, BN, U)

    # output_layer readout once, outside the kernel (lane-dense kernel output)
    preds = jnp.einsum("tnu,uo->tno", h_keep, params["Wout"]) + params["bout"]
    preds = preds.reshape(keep.shape[0], BATCH, N_NODES, OUT_DIM)
    return jnp.transpose(preds, (1, 0, 2, 3))                # [B, Tk, N, O]


if __name__ == "__main__":
    key = jax.random.PRNGKey(0)
    pkey, xkey, ykey = jax.random.split(key, 3)
    params = init_params(pkey)

    x_input = jax.random.normal(xkey, (HORIZON, BATCH, N_NODES, IN_DIM),
                                jnp.float32)
    y_input = jax.random.normal(ykey, (Y_LEN, BATCH, N_NODES, IN_DIM),
                                jnp.float32)
    x_times = np.arange(HORIZON, dtype=np.float32).reshape(-1, 1)
    y_times = np.arange(HORIZON, HORIZON + Y_LEN,
                        dtype=np.float32).reshape(-1, 1)

    out = str_godes_forward(params, x_input, y_input, x_times, y_times)
    out = jax.block_until_ready(out)
    assert out.shape == (BATCH, Y_LEN, N_NODES, OUT_DIM), out.shape
    assert bool(jnp.all(jnp.isfinite(out)))
    print("KERNEL_OK")
</pallas_src>

<mosaic_0001>
module attributes {stable_mosaic.version = 11 : i64} {
  func.func @_seq_kernel(%arg0: i32, %arg1: memref<4xf32, #tpu.memory_space<smem>>, %arg2: memref<16x32xf32, #tpu.memory_space<vmem>>, %arg3: memref<1x16x64xf32, #tpu.memory_space<vmem>>, %arg4: memref<1x16x32xf32, #tpu.memory_space<vmem>>, %arg5: memref<3x16x16xf32, #tpu.memory_space<vmem>>, %arg6: memref<128x32xf32, #tpu.memory_space<vmem>>, %arg7: memref<32x64xf32, #tpu.memory_space<vmem>>, %arg8: memref<32x32xf32, #tpu.memory_space<vmem>>, %arg9: memref<1x16x32xf32, #tpu.memory_space<vmem>>, %arg10: memref<16x32xf32, #tpu.memory_space<vmem>>) attributes {dimension_semantics = [#tpu.dimension_semantics<arbitrary>], iteration_bounds = array<i64: 4>, scalar_prefetch = 0 : i64, scratch_operands = 1 : i64, tpu.core_type = #tpu.core_type<tc>, window_params = [{transform_indices = @transform_0, window_bounds = array<i64: 4>}, {pipeline_mode = #tpu.pipeline_mode<synchronous>, transform_indices = @transform_1, window_bounds = array<i64: 16, 32>}, {transform_indices = @transform_2, window_bounds = array<i64: 1, 16, 64>}, {transform_indices = @transform_3, window_bounds = array<i64: 1, 16, 32>}, {pipeline_mode = #tpu.pipeline_mode<synchronous>, transform_indices = @transform_4, window_bounds = array<i64: 3, 16, 16>}, {pipeline_mode = #tpu.pipeline_mode<synchronous>, transform_indices = @transform_5, window_bounds = array<i64: 128, 32>}, {pipeline_mode = #tpu.pipeline_mode<synchronous>, transform_indices = @transform_6, window_bounds = array<i64: 32, 64>}, {pipeline_mode = #tpu.pipeline_mode<synchronous>, transform_indices = @transform_7, window_bounds = array<i64: 32, 32>}, {transform_indices = @transform_8, window_bounds = array<i64: 1, 16, 32>}]} {
    %c0_i32 = arith.constant 0 : i32
    %0 = arith.cmpi eq, %arg0, %c0_i32 : i32
    %1 = arith.extui %0 : i1 to i32
    %c0_i32_0 = arith.constant 0 : i32
    %2 = arith.cmpi ne, %1, %c0_i32_0 : i32
    scf.if %2 {
      %c0_33 = arith.constant 0 : index
      %c0_34 = arith.constant 0 : index
      %50 = vector.load %arg2[%c0_33, %c0_34] : memref<16x32xf32, #tpu.memory_space<vmem>>, vector<16x32xf32>
      %c0_35 = arith.constant 0 : index
      %c0_36 = arith.constant 0 : index
      %51 = vector.load %arg10[%c0_35, %c0_36] : memref<16x32xf32, #tpu.memory_space<vmem>>, vector<16x32xf32>
      tpu.vector_store %arg10[%c0_35, %c0_36], %50 {strides = array<i32>} : memref<16x32xf32, #tpu.memory_space<vmem>>, vector<16x32xf32>,
    } else {
    }
    %c0 = arith.constant 0 : index
    %c0_1 = arith.constant 0 : index
    %3 = vector.load %arg10[%c0, %c0_1] : memref<16x32xf32, #tpu.memory_space<vmem>>, vector<16x32xf32>
    %4 = arith.index_cast %arg0 : i32 to index
    %5 = memref.load %arg1[%4] : memref<4xf32, #tpu.memory_space<smem>>
    %c0_2 = arith.constant 0 : index
    %c0_3 = arith.constant 0 : index
    %c0_4 = arith.constant 0 : index
    %6 = vector.load %arg5[%c0_2, %c0_3, %c0_4] : memref<3x16x16xf32, #tpu.memory_space<vmem>>, vector<1x16x16xf32>
    %7 = vector.shape_cast %6 : vector<1x16x16xf32> to vector<16x16xf32>
    %cst = arith.constant dense<0.000000e+00> : vector<16x32xf32>
    %8 = tpu.matmul %7, %3, %cst {dimension_numbers = #tpu.dot_dimension_numbers<[1], [0], [0], [1], [0, 0, 1, 1], [], []>} : vector<16x16xf32>, vector<16x32xf32>, vector<16x32xf32> -> vector<16x32xf32>
    %c1 = arith.constant 1 : index
    %c0_5 = arith.constant 0 : index
    %c0_6 = arith.constant 0 : index
    %9 = vector.load %arg5[%c1, %c0_5, %c0_6] : memref<3x16x16xf32, #tpu.memory_space<vmem>>, vector<1x16x16xf32>
    %10 = vector.shape_cast %9 : vector<1x16x16xf32> to vector<16x16xf32>
    %cst_7 = arith.constant dense<0.000000e+00> : vector<16x32xf32>
    %11 = tpu.matmul %10, %3, %cst_7 {dimension_numbers = #tpu.dot_dimension_numbers<[1], [0], [0], [1], [0, 0, 1, 1], [], []>} : vector<16x16xf32>, vector<16x32xf32>, vector<16x32xf32> -> vector<16x32xf32>
    %c2 = arith.constant 2 : index
    %c0_8 = arith.constant 0 : index
    %c0_9 = arith.constant 0 : index
    %12 = vector.load %arg5[%c2, %c0_8, %c0_9] : memref<3x16x16xf32, #tpu.memory_space<vmem>>, vector<1x16x16xf32>
    %13 = vector.shape_cast %12 : vector<1x16x16xf32> to vector<16x16xf32>
    %cst_10 = arith.constant dense<0.000000e+00> : vector<16x32xf32>
    %14 = tpu.matmul %13, %3, %cst_10 {dimension_numbers = #tpu.dot_dimension_numbers<[1], [0], [0], [1], [0, 0, 1, 1], [], []>} : vector<16x16xf32>, vector<16x32xf32>, vector<16x32xf32> -> vector<16x32xf32>
    %15 = tpu.concatenate %3, %8, %11, %14 in 1 : vector<16x32xf32>, vector<16x32xf32>, vector<16x32xf32>, vector<16x32xf32> -> vector<16x128xf32>
    %c0_11 = arith.constant 0 : index
    %c0_12 = arith.constant 0 : index
    %16 = vector.load %arg6[%c0_11, %c0_12] : memref<128x32xf32, #tpu.memory_space<vmem>>, vector<128x32xf32>
    %cst_13 = arith.constant dense<0.000000e+00> : vector<16x32xf32>
    %17 = tpu.matmul %15, %16, %cst_13 {dimension_numbers = #tpu.dot_dimension_numbers<[1], [0], [0], [1], [0, 0, 1, 1], [], []>} : vector<16x128xf32>, vector<128x32xf32>, vector<16x32xf32> -> vector<16x32xf32>
    %18 = math.tanh %17 : vector<16x32xf32>
    %19 = vector.broadcast %5 : f32 to vector<16x32xf32>
    %20 = arith.mulf %19, %18 : vector<16x32xf32>
    %21 = arith.addf %3, %20 : vector<16x32xf32>
    %c0_14 = arith.constant 0 : index
    %c0_15 = arith.constant 0 : index
    %22 = vector.load %arg7[%c0_14, %c0_15] : memref<32x64xf32, #tpu.memory_space<vmem>>, vector<32x64xf32>
    %cst_16 = arith.constant dense<0.000000e+00> : vector<16x64xf32>
    %23 = tpu.matmul %21, %22, %cst_16 {dimension_numbers = #tpu.dot_dimension_numbers<[1], [0], [0], [1], [0, 0, 1, 1], [], []>} : vector<16x32xf32>, vector<32x64xf32>, vector<16x64xf32> -> vector<16x64xf32>
    %c0_17 = arith.constant 0 : index
    %c0_18 = arith.constant 0 : index
    %c0_19 = arith.constant 0 : index
    %24 = vector.load %arg3[%c0_17, %c0_18, %c0_19] : memref<1x16x64xf32, #tpu.memory_space<vmem>>, vector<1x16x64xf32>
    %25 = vector.shape_cast %24 : vector<1x16x64xf32> to vector<16x64xf32>
    %26 = arith.addf %23, %25 : vector<16x64xf32>
    %27 = arith.negf %26 : vector<16x64xf32>
    %28 = math.exp %27 : vector<16x64xf32>
    %cst_20 = arith.constant 1.000000e+00 : f32
    %29 = vector.broadcast %cst_20 : f32 to vector<16x64xf32>
    %30 = arith.addf %29, %28 : vector<16x64xf32>
    %31 = arith.divf %29, %30 : vector<16x64xf32>
    %32 = vector.extract_strided_slice %31 {offsets = [0, 0], sizes = [16, 32], strides = [1, 1]} : vector<16x64xf32> to vector<16x32xf32>
    %33 = vector.extract_strided_slice %31 {offsets = [0, 32], sizes = [16, 32], strides = [1, 1]} : vector<16x64xf32> to vector<16x32xf32>
    %34 = arith.mulf %21, %32 : vector<16x32xf32>
    %c0_21 = arith.constant 0 : index
    %c0_22 = arith.constant 0 : index
    %35 = vector.load %arg8[%c0_21, %c0_22] : memref<32x32xf32, #tpu.memory_space<vmem>>, vector<32x32xf32>
    %cst_23 = arith.constant dense<0.000000e+00> : vector<16x32xf32>
    %36 = tpu.matmul %34, %35, %cst_23 {dimension_numbers = #tpu.dot_dimension_numbers<[1], [0], [0], [1], [0, 0, 1, 1], [], []>} : vector<16x32xf32>, vector<32x32xf32>, vector<16x32xf32> -> vector<16x32xf32>
    %c0_24 = arith.constant 0 : index
    %c0_25 = arith.constant 0 : index
    %c0_26 = arith.constant 0 : index
    %37 = vector.load %arg4[%c0_24, %c0_25, %c0_26] : memref<1x16x32xf32, #tpu.memory_space<vmem>>, vector<1x16x32xf32>
    %38 = vector.shape_cast %37 : vector<1x16x32xf32> to vector<16x32xf32>
    %39 = arith.addf %36, %38 : vector<16x32xf32>
    %40 = math.tanh %39 : vector<16x32xf32>
    %41 = arith.mulf %33, %21 : vector<16x32xf32>
    %cst_27 = arith.constant 1.000000e+00 : f32
    %42 = vector.broadcast %cst_27 : f32 to vector<16x32xf32>
    %43 = arith.subf %42, %33 : vector<16x32xf32>
    %44 = arith.mulf %43, %40 : vector<16x32xf32>
    %45 = arith.addf %41, %44 : vector<16x32xf32>
    %c0_28 = arith.constant 0 : index
    %c0_29 = arith.constant 0 : index
    %46 = vector.load %arg10[%c0_28, %c0_29] : memref<16x32xf32, #tpu.memory_space<vmem>>, vector<16x32xf32>
    tpu.vector_store %arg10[%c0_28, %c0_29], %45 {strides = array<i32>} : memref<16x32xf32, #tpu.memory_space<vmem>>, vector<16x32xf32>,
    %c0_30 = arith.constant 0 : index
    %c0_31 = arith.constant 0 : index
    %c0_32 = arith.constant 0 : index
    %47 = vector.load %arg9[%c0_30, %c0_31, %c0_32] : memref<1x16x32xf32, #tpu.memory_space<vmem>>, vector<1x16x32xf32>
    %48 = vector.shape_cast %47 : vector<1x16x32xf32> to vector<16x32xf32>
    %49 = vector.shape_cast %45 : vector<16x32xf32> to vector<1x16x32xf32>
    tpu.vector_store %arg9[%c0_30, %c0_31, %c0_32], %49 {strides = array<i32>} : memref<1x16x32xf32, #tpu.memory_space<vmem>>, vector<1x16x32xf32>,
    return
  }
  func.func @transform_0(%arg0: i32) -> i32 {
    %c0_i32 = arith.constant 0 : i32
    %c0_i32_0 = arith.constant 0 : i32
    return %c0_i32 : i32
  }
  func.func @transform_1(%arg0: i32) -> (i32, i32) {
    %c0_i32 = arith.constant 0 : i32
    %c0_i32_0 = arith.constant 0 : i32
    %c0_i32_1 = arith.constant 0 : i32
    return %c0_i32, %c0_i32_0 : i32, i32
  }
  func.func @transform_2(%arg0: i32) -> (i32, i32, i32) {
    %c0_i32 = arith.constant 0 : i32
    %c0_i32_0 = arith.constant 0 : i32
    %c0_i32_1 = arith.constant 0 : i32
    return %arg0, %c0_i32, %c0_i32_0 : i32, i32, i32
  }
  func.func @transform_3(%arg0: i32) -> (i32, i32, i32) {
    %c0_i32 = arith.constant 0 : i32
    %c0_i32_0 = arith.constant 0 : i32
    %c0_i32_1 = arith.constant 0 : i32
    return %arg0, %c0_i32, %c0_i32_0 : i32, i32, i32
  }
  func.func @transform_4(%arg0: i32) -> (i32, i32, i32) {
    %c0_i32 = arith.constant 0 : i32
    %c0_i32_0 = arith.constant 0 : i32
    %c0_i32_1 = arith.constant 0 : i32
    %c0_i32_2 = arith.constant 0 : i32
    return %c0_i32, %c0_i32_0, %c0_i32_1 : i32, i32, i32
  }
  func.func @transform_5(%arg0: i32) -> (i32, i32) {
    %c0_i32 = arith.constant 0 : i32
    %c0_i32_0 = arith.constant 0 : i32
    %c0_i32_1 = arith.constant 0 : i32
    return %c0_i32, %c0_i32_0 : i32, i32
  }
  func.func @transform_6(%arg0: i32) -> (i32, i32) {
    %c0_i32 = arith.constant 0 : i32
    %c0_i32_0 = arith.constant 0 : i32
    %c0_i32_1 = arith.constant 0 : i32
    return %c0_i32, %c0_i32_0 : i32, i32
  }
  func.func @transform_7(%arg0: i32) -> (i32, i32) {
    %c0_i32 = arith.constant 0 : i32
    %c0_i32_0 = arith.constant 0 : i32
    %c0_i32_1 = arith.constant 0 : i32
    return %c0_i32, %c0_i32_0 : i32, i32
  }
  func.func @transform_8(%arg0: i32) -> (i32, i32, i32) {
    %c0_i32 = arith.constant 0 : i32
    %c0_i32_0 = arith.constant 0 : i32
    %c0_i32_1 = arith.constant 0 : i32
    return %arg0, %c0_i32, %c0_i32_0 : i32, i32, i32
  }
}

</mosaic_0001>

<llo_original>
// kernel: tpu_custom_call.1
$region0: #{tpu_custom_call.1}
  #allocation0 [shape = 'u32[]', space=smem, size = 0x4, offset = 0x4, fixed_abs, tag = 'smem constant byte address 0x4 - core index']
  #allocation1 [shape = 'u32[144,128]{1,0:T(1,128)}', space=vmem, size = 0x12000, scoped, tag = 'internal scratch']
  #allocation2 [shape = 'f32[16,32]{1,0:T(8,128)}', space=vmem, size = 0x2000, scoped, tag = 'scratch operand']
  %s0 = inlined_call_operand.hbm [shape: f32[4], index: 0, kind: input, shape index: {}]
  %s1 = inlined_call_operand.hbm [shape: f32[16,32], index: 1, kind: input, shape index: {}]
  %s2 = inlined_call_operand.vmem [shape: f32[4,16,64], index: 2, kind: input, shape index: {}]
  %s3 = inlined_call_operand.vmem [shape: f32[4,16,32], index: 3, kind: input, shape index: {}]
  %s4 = inlined_call_operand.hbm [shape: f32[3,16,16], index: 4, kind: input, shape index: {}]
  %s5 = inlined_call_operand.vmem [shape: f32[128,32], index: 5, kind: input, shape index: {}]
  %s6 = inlined_call_operand.vmem [shape: f32[32,64], index: 6, kind: input, shape index: {}]
  %s7 = inlined_call_operand.hbm [shape: f32[32,32], index: 7, kind: input, shape index: {}]
  %s8 = inlined_call_operand.hbm [shape: f32[4,16,32], index: 8, kind: output, shape index: {}]
  %s9 = sld [smem:[#allocation0]]
  $region85: #{tpu_custom_call.1} parent=0
    _
  %s11 = ssub.s32 1, %s9
  %s12 = scalar_select 0, %s11, %s9
  $region1: #{tpu_custom_call.1} parent=0
    #allocation3 [shape = 'u8[512]{0}', space=smem, size = 0x200, scoped, tag = 'input window, operand 0, single buffered']
    #allocation4 [shape = 's32[2]{0}', space=sflag, size = 0x8, scoped, tag = 'scoped memory for tpu_custom_call.1']
    #allocation5 [shape = 's32[2]{0}', space=sflag, size = 0x8, scoped, tag = 'scoped memory for tpu_custom_call.1']
    #allocation6 [shape = 's32[2]{0}', space=sflag, size = 0x8, scoped, tag = 'scoped memory for tpu_custom_call.1']
    #allocation7 [shape = 'u8[8192]{0}', space=vmem, size = 0x2000, scoped, tag = 'input window, operand 1, single buffered']
    #allocation8 [shape = 'u8[24576]{0}', space=vmem, size = 0x6000, scoped, tag = 'input window, operand 4, single buffered']
    #allocation9 [shape = 's32[1]{0}', space=sflag, size = 0x4, scoped, tag = 'scoped memory for tpu_custom_call.1']
    #allocation10 [shape = 'u8[16384]{0}', space=vmem, size = 0x4000, scoped, tag = 'input window, operand 7, single buffered']
    #allocation11 [shape = 'u8[16384]{0}', space=vmem, size = 0x4000, scoped, tag = 'output window, operand 0']
    %13 = vsyncpa [#allocation6], 0
    %14 = vsyncpa [#allocation4], 0
    %15 = vsyncpa [#allocation9], 0
    %16 = vsyncpa [#allocation5], 0
    %s17 = scalar_lea.sflag [#allocation5], 1
    %18 = vsyncpa %s17, 0
    loop: start=0, step=1, limit=6
    $region2: #{tpu_custom_call.1} parent=1 // loop_pre_header
      _
    $region3: #{tpu_custom_call.1} parent=1 // loop_header
      %s20 = sphi 0, %s24
      %p21 = scmp.ge.s32.totalorder %s20, 6
      %s28 = sphi 0, %s28
      %s30 = sphi 0, %s28
      %s31 = sphi 0, %s30
      %s45 = sphi 0, %s31
      %s49 = sphi 0, %s49
      %s51 = sphi 0, %s49
      %s52 = sphi 0, %s51
      %s66 = sphi 0, %s52
      %s72 = sphi 0, %s74
      %s75 = sphi 0, %s72
      %s76 = sphi 0, %s75
      %s92 = sphi 0, %s76
      %s98 = sphi 0, %s100
      %s101 = sphi 0, %s98
      %s102 = sphi 0, %s101
      %s118 = sphi 0, %s102
      %s122 = sphi 0, %s122
      %s124 = sphi 0, %s122
      %s125 = sphi 0, %s124
      %s139 = sphi 0, %s125
      %s143 = sphi 0, %s143
      %s145 = sphi 0, %s143
      %s146 = sphi 0, %s145
      %s160 = sphi 0, %s146
      %s164 = sphi 0, %s164
      %s166 = sphi 0, %s164
      %s167 = sphi 0, %s166
      %s181 = sphi 0, %s167
      %s185 = sphi 0, %s185
      %s187 = sphi 0, %s185
      %s188 = sphi 0, %s187
      %s202 = sphi 0, %s188
      %s208 = sphi 0, %s210
      %s211 = sphi 0, %s208
      %s212 = sphi 0, %s211
      %s228 = sphi 0, %s212
    $region4: #{tpu_custom_call.1} parent=1 // loop_header_branch
      %23 = sbr.rel (%p21) target = $region8
    $region5: #{tpu_custom_call.1} parent=1 // loop_body
      %s25 = ssub.s32 %s20, 1
      %s26 = ssub.s32 %s20, 2
      %s27 = sadd.s32 %s20, 1
      %s29 = sadd.s32 %s28, 1
      %p32 = scmp.eq.s32.totalorder %s20, 3
      %p33 = scmp.ne.s32.totalorder %s28, %s30
      %p34 = scmp.eq.s32.totalorder %s20, 0
      %p35 = por %p33, %p34
      %p36 = scmp.ne.s32.totalorder %s28, %s30
      %p37 = scmp.eq.s32.totalorder %s25, 3
      %p38 = por %p36, %p37
      %p39 = scmp.ne.s32.totalorder %s30, %s31
      %p40 = scmp.eq.s32.totalorder %s25, 0
      %p41 = por %p39, %p40
      %p42 = scmp.ne.s32.totalorder %s30, %s31
      %p43 = scmp.eq.s32.totalorder %s26, 3
      %p44 = por %p42, %p43
      %p46 = scmp.ne.s32.totalorder %s31, %s45
      %p47 = scmp.eq.s32.totalorder %s26, 0
      %p48 = por %p46, %p47
      %s50 = sadd.s32 %s49, 1
      %p53 = scmp.eq.s32.totalorder %s20, 3
      %p54 = scmp.ne.s32.totalorder %s49, %s51
      %p55 = scmp.eq.s32.totalorder %s20, 0
      %p56 = por %p54, %p55
      %p57 = scmp.ne.s32.totalorder %s49, %s51
      %p58 = scmp.eq.s32.totalorder %s25, 3
      %p59 = por %p57, %p58
      %p60 = scmp.ne.s32.totalorder %s51, %s52
      %p61 = scmp.eq.s32.totalorder %s25, 0
      %p62 = por %p60, %p61
      %p63 = scmp.ne.s32.totalorder %s51, %s52
      %p64 = scmp.eq.s32.totalorder %s26, 3
      %p65 = por %p63, %p64
      %p67 = scmp.ne.s32.totalorder %s52, %s66
      %p68 = scmp.eq.s32.totalorder %s26, 0
      %p69 = por %p67, %p68
      %s70 = ssub.s32 %s20, %s27
      %p71 = scmp.eq.s32.totalorder %s70, 0
      %s73 = sadd.s32 %s72, 1
      %s74 = scalar_select %p71, %s72, %s73
      %p77 = pneg %p71
      %p78 = scmp.eq.s32.totalorder %s20, 3
      %p79 = por %p77, %p78
      %p80 = scmp.ne.s32.totalorder %s72, %s75
      %p81 = scmp.eq.s32.totalorder %s20, 0
      %p82 = por %p80, %p81
      %p83 = scmp.ne.s32.totalorder %s72, %s75
      %p84 = scmp.eq.s32.totalorder %s25, 3
      %p85 = por %p83, %p84
      %p86 = scmp.ne.s32.totalorder %s75, %s76
      %p87 = scmp.eq.s32.totalorder %s25, 0
      %p88 = por %p86, %p87
      %p89 = scmp.ne.s32.totalorder %s75, %s76
      %p90 = scmp.eq.s32.totalorder %s26, 3
      %p91 = por %p89, %p90
      %p93 = scmp.ne.s32.totalorder %s76, %s92
      %p94 = scmp.eq.s32.totalorder %s26, 0
      %p95 = por %p93, %p94
      %s96 = ssub.s32 %s20, %s27
      %p97 = scmp.eq.s32.totalorder %s96, 0
      %s99 = sadd.s32 %s98, 1
      %s100 = scalar_select %p97, %s98, %s99
      %p103 = pneg %p97
      %p104 = scmp.eq.s32.totalorder %s20, 3
      %p105 = por %p103, %p104
      %p106 = scmp.ne.s32.totalorder %s98, %s101
      %p107 = scmp.eq.s32.totalorder %s20, 0
      %p108 = por %p106, %p107
      %p109 = scmp.ne.s32.totalorder %s98, %s101
      %p110 = scmp.eq.s32.totalorder %s25, 3
      %p111 = por %p109, %p110
      %p112 = scmp.ne.s32.totalorder %s101, %s102
      %p113 = scmp.eq.s32.totalorder %s25, 0
      %p114 = por %p112, %p113
      %p115 = scmp.ne.s32.totalorder %s101, %s102
      %p116 = scmp.eq.s32.totalorder %s26, 3
      %p117 = por %p115, %p116
      %p119 = scmp.ne.s32.totalorder %s102, %s118
      %p120 = scmp.eq.s32.totalorder %s26, 0
      %p121 = por %p119, %p120
      %s123 = sadd.s32 %s122, 1
      %p126 = scmp.eq.s32.totalorder %s20, 3
      %p127 = scmp.ne.s32.totalorder %s122, %s124
      %p128 = scmp.eq.s32.totalorder %s20, 0
      %p129 = por %p127, %p128
      %p130 = scmp.ne.s32.totalorder %s122, %s124
      %p131 = scmp.eq.s32.totalorder %s25, 3
      %p132 = por %p130, %p131
      %p133 = scmp.ne.s32.totalorder %s124, %s125
      %p134 = scmp.eq.s32.totalorder %s25, 0
      %p135 = por %p133, %p134
      %p136 = scmp.ne.s32.totalorder %s124, %s125
      %p137 = scmp.eq.s32.totalorder %s26, 3
      %p138 = por %p136, %p137
      %p140 = scmp.ne.s32.totalorder %s125, %s139
      %p141 = scmp.eq.s32.totalorder %s26, 0
      %p142 = por %p140, %p141
      %s144 = sadd.s32 %s143, 1
      %p147 = scmp.eq.s32.totalorder %s20, 3
      %p148 = scmp.ne.s32.totalorder %s143, %s145
      %p149 = scmp.eq.s32.totalorder %s20, 0
      %p150 = por %p148, %p149
      %p151 = scmp.ne.s32.totalorder %s143, %s145
      %p152 = scmp.eq.s32.totalorder %s25, 3
      %p153 = por %p151, %p152
      %p154 = scmp.ne.s32.totalorder %s145, %s146
      %p155 = scmp.eq.s32.totalorder %s25, 0
      %p156 = por %p154, %p155
      %p157 = scmp.ne.s32.totalorder %s145, %s146
      %p158 = scmp.eq.s32.totalorder %s26, 3
      %p159 = por %p157, %p158
      %p161 = scmp.ne.s32.totalorder %s146, %s160
      %p162 = scmp.eq.s32.totalorder %s26, 0
      %p163 = por %p161, %p162
      %s165 = sadd.s32 %s164, 1
      %p168 = scmp.eq.s32.totalorder %s20, 3
      %p169 = scmp.ne.s32.totalorder %s164, %s166
      %p170 = scmp.eq.s32.totalorder %s20, 0
      %p171 = por %p169, %p170
      %p172 = scmp.ne.s32.totalorder %s164, %s166
      %p173 = scmp.eq.s32.totalorder %s25, 3
      %p174 = por %p172, %p173
      %p175 = scmp.ne.s32.totalorder %s166, %s167
      %p176 = scmp.eq.s32.totalorder %s25, 0
      %p177 = por %p175, %p176
      %p178 = scmp.ne.s32.totalorder %s166, %s167
      %p179 = scmp.eq.s32.totalorder %s26, 3
      %p180 = por %p178, %p179
      %p182 = scmp.ne.s32.totalorder %s167, %s181
      %p183 = scmp.eq.s32.totalorder %s26, 0
      %p184 = por %p182, %p183
      %s186 = sadd.s32 %s185, 1
      %p189 = scmp.eq.s32.totalorder %s20, 3
      %p190 = scmp.ne.s32.totalorder %s185, %s187
      %p191 = scmp.eq.s32.totalorder %s20, 0
      %p192 = por %p190, %p191
      %p193 = scmp.ne.s32.totalorder %s185, %s187
      %p194 = scmp.eq.s32.totalorder %s25, 3
      %p195 = por %p193, %p194
      %p196 = scmp.ne.s32.totalorder %s187, %s188
      %p197 = scmp.eq.s32.totalorder %s25, 0
      %p198 = por %p196, %p197
      %p199 = scmp.ne.s32.totalorder %s187, %s188
      %p200 = scmp.eq.s32.totalorder %s26, 3
      %p201 = por %p199, %p200
      %p203 = scmp.ne.s32.totalorder %s188, %s202
      %p204 = scmp.eq.s32.totalorder %s26, 0
      %p205 = por %p203, %p204
      %s206 = ssub.s32 %s20, %s27
      %p207 = scmp.eq.s32.totalorder %s206, 0
      %s209 = sadd.s32 %s208, 1
      %s210 = scalar_select %p207, %s208, %s209
      %p213 = pneg %p207
      %p214 = scmp.eq.s32.totalorder %s20, 3
      %p215 = por %p213, %p214
      %p216 = scmp.ne.s32.totalorder %s208, %s211
      %p217 = scmp.eq.s32.totalorder %s20, 0
      %p218 = por %p216, %p217
      %p219 = scmp.ne.s32.totalorder %s208, %s211
      %p220 = scmp.eq.s32.totalorder %s25, 3
      %p221 = por %p219, %p220
      %p222 = scmp.ne.s32.totalorder %s211, %s212
      %p223 = scmp.eq.s32.totalorder %s25, 0
      %p224 = por %p222, %p223
      %p225 = scmp.ne.s32.totalorder %s211, %s212
      %p226 = scmp.eq.s32.totalorder %s26, 3
      %p227 = por %p225, %p226
      %p229 = scmp.ne.s32.totalorder %s212, %s228
      %p230 = scmp.eq.s32.totalorder %s26, 0
      %p231 = por %p229, %p230
      %p232 = scmp.le.s32.totalorder 1, %s20
      %p233 = scmp.lt.s32.totalorder %s20, 5
      %p234 = pnand %p232, %p233
      %p235 = pneg %p234
      // Predicated region
      $region9: #{tpu_custom_call.1} parent=5 // pred_check
        _
      $region10: #{tpu_custom_call.1} parent=5 // pred_check_branch
        %237 = sbr.rel (%p234) target = $region12
      $region11: #{tpu_custom_call.1} parent=5 // pred_region
        %s238 = ssub.s32 %s20, 1
        // Predicated region
        $region13: #{tpu_custom_call.1} parent=11 // pred_check
          %p239 = pneg %p41
        $region14: #{tpu_custom_call.1} parent=11 // pred_check_branch
          %241 = sbr.rel (%p239) target = $region16
        $region15: #{tpu_custom_call.1} parent=11 // pred_region
          %s243 = ssub.s32 16, 16
          %244 = vsyncadd [#allocation6], %s243
          %247 = dma.hbm_to_smem %s0, 16, [#allocation3], [#allocation6]
        $region16: #{tpu_custom_call.1} parent=11 // pred_fallthru
          _
        // Predicated region
        $region17: #{tpu_custom_call.1} parent=11 // pred_check
          %p248 = pneg %p62
        $region18: #{tpu_custom_call.1} parent=11 // pred_check_branch
          %250 = sbr.rel (%p248) target = $region20
        $region19: #{tpu_custom_call.1} parent=11 // pred_region
          %s252 = ssub.s32 256, 256
          %253 = vsyncadd [#allocation4], %s252
          %s254 = sshll.u32 [#allocation7], 4
          %s255 = int_to_ptr.vmem [resolvable:$true] %s254
          %260 = dma.hbm_to_vmem [thread:$0]  %s1, 256, %s255, [#allocation4], 128, 128, 8
        $region20: #{tpu_custom_call.1} parent=11 // pred_fallthru
          _
        // Predicated region
        $region21: #{tpu_custom_call.1} parent=11 // pred_check
          %p261 = pneg %p135
        $region22: #{tpu_custom_call.1} parent=11 // pred_check_branch
          %263 = sbr.rel (%p261) target = $region24
        $region23: #{tpu_custom_call.1} parent=11 // pred_region
          %s265 = ssub.s32 768, 768
          %266 = vsyncadd [#allocation9], %s265
          %s267 = sshll.u32 [#allocation8], 4
          %s268 = int_to_ptr.vmem [resolvable:$true] %s267
          %273 = dma.hbm_to_vmem [thread:$0]  %s4, 768, %s268, [#allocation9], 128, 128, 8
        $region24: #{tpu_custom_call.1} parent=11 // pred_fallthru
          _
        // Predicated region
        $region25: #{tpu_custom_call.1} parent=11 // pred_check
          %p274 = pneg %p156
        $region26: #{tpu_custom_call.1} parent=11 // pred_check_branch
          %276 = sbr.rel (%p274) target = $region28
        $region27: #{tpu_custom_call.1} parent=11 // pred_region
          _
        $region28: #{tpu_custom_call.1} parent=11 // pred_fallthru
          _
        // Predicated region
        $region29: #{tpu_custom_call.1} parent=11 // pred_check
          %p277 = pneg %p177
        $region30: #{tpu_custom_call.1} parent=11 // pred_check_branch
          %279 = sbr.rel (%p277) target = $region32
        $region31: #{tpu_custom_call.1} parent=11 // pred_region
          _
        $region32: #{tpu_custom_call.1} parent=11 // pred_fallthru
          _
        // Predicated region
        $region33: #{tpu_custom_call.1} parent=11 // pred_check
          %p280 = pneg %p198
        $region34: #{tpu_custom_call.1} parent=11 // pred_check_branch
          %282 = sbr.rel (%p280) target = $region36
        $region35: #{tpu_custom_call.1} parent=11 // pred_region
          %s284 = ssub.s32 512, 512
          %285 = vsyncadd [#allocation9], %s284
          %s286 = sshll.u32 [#allocation10], 4
          %s287 = int_to_ptr.vmem [resolvable:$true] %s286
          %292 = dma.hbm_to_vmem [thread:$0]  %s7, 512, %s287, [#allocation9], 128, 128, 8
        $region36: #{tpu_custom_call.1} parent=11 // pred_fallthru
          _
      $region12: #{tpu_custom_call.1} parent=5 // pred_fallthru
        _
      %p293 = scmp.lt.s32.totalorder %s20, 4
      // Predicated region
      $region37: #{tpu_custom_call.1} parent=5 // pred_check
        %p294 = pneg %p293
      $region38: #{tpu_custom_call.1} parent=5 // pred_check_branch
        %296 = sbr.rel (%p294) target = $region40
      $region39: #{tpu_custom_call.1} parent=5 // pred_region
        // Predicated region
        $region41: #{tpu_custom_call.1} parent=39 // pred_check
          %p297 = pneg %p82
        $region42: #{tpu_custom_call.1} parent=39 // pred_check_branch
          %299 = sbr.rel (%p297) target = $region44
        $region43: #{tpu_custom_call.1} parent=39 // pred_region
          %p300 = scmp.lt.s32.totalorder %s20, 3
          %s301 = scalar_select %p300, %s20, 3
          %s302 = smul.addr %s301, 2
          %s303 = smul.addr %s302, 8
          %s304 = scalar_lea.vmem %s2, %s303
        $region44: #{tpu_custom_call.1} parent=39 // pred_fallthru
          _
        // Predicated region
        $region45: #{tpu_custom_call.1} parent=39 // pred_check
          %p305 = pneg %p108
        $region46: #{tpu_custom_call.1} parent=39 // pred_check_branch
          %307 = sbr.rel (%p305) target = $region48
        $region47: #{tpu_custom_call.1} parent=39 // pred_region
          %p308 = scmp.lt.s32.totalorder %s20, 3
          %s309 = scalar_select %p308, %s20, 3
          %s310 = smul.addr %s309, 2
          %s311 = smul.addr %s310, 8
          %s312 = scalar_lea.vmem %s3, %s311
        $region48: #{tpu_custom_call.1} parent=39 // pred_fallthru
          _
      $region40: #{tpu_custom_call.1} parent=5 // pred_fallthru
        _
      %p313 = scmp.le.s32.totalorder 1, %s20
      %p314 = scmp.lt.s32.totalorder %s20, 5
      %p315 = pnand %p313, %p314
      %p316 = pneg %p315
      // Predicated region
      $region49: #{tpu_custom_call.1} parent=5 // pred_check
        _
      $region50: #{tpu_custom_call.1} parent=5 // pred_check_branch
        %318 = sbr.rel (%p315) target = $region52
      $region51: #{tpu_custom_call.1} parent=5 // pred_region
        %s319 = ssub.s32 %s20, 1
        // Predicated region
        $region53: #{tpu_custom_call.1} parent=51 // pred_check
          %p320 = pneg %p41
        $region54: #{tpu_custom_call.1} parent=51 // pred_check_branch
          %322 = sbr.rel (%p320) target = $region56
        $region55: #{tpu_custom_call.1} parent=51 // pred_region
          %323 = dma.done [#allocation6], 16
        $region56: #{tpu_custom_call.1} parent=51 // pred_fallthru
          _
        // Predicated region
        $region57: #{tpu_custom_call.1} parent=51 // pred_check
          %p324 = pneg %p62
        $region58: #{tpu_custom_call.1} parent=51 // pred_check_branch
          %326 = sbr.rel (%p324) target = $region60
        $region59: #{tpu_custom_call.1} parent=51 // pred_region
          %327 = dma.done [#allocation4], 256
        $region60: #{tpu_custom_call.1} parent=51 // pred_fallthru
          _
        // Predicated region
        $region61: #{tpu_custom_call.1} parent=51 // pred_check
          %p328 = pneg %p135
        $region62: #{tpu_custom_call.1} parent=51 // pred_check_branch
          %330 = sbr.rel (%p328) target = $region64
        $region63: #{tpu_custom_call.1} parent=51 // pred_region
          %331 = dma.done [#allocation9], 768
        $region64: #{tpu_custom_call.1} parent=51 // pred_fallthru
          _
        // Predicated region
        $region65: #{tpu_custom_call.1} parent=51 // pred_check
          %p332 = pneg %p198
        $region66: #{tpu_custom_call.1} parent=51 // pred_check_branch
          %334 = sbr.rel (%p332) target = $region68
        $region67: #{tpu_custom_call.1} parent=51 // pred_region
          %335 = dma.done [#allocation9], 512
        $region68: #{tpu_custom_call.1} parent=51 // pred_fallthru
          _
        %336 = sfence
        %p337 = pneg %p41
        %p338 = pneg %p38
        %p339 = pneg %p62
        %p340 = pneg %p59
        %p341 = scmp.lt.s32.totalorder %s25, 3
        %s342 = scalar_select %p341, %s25, 3
        %s343 = smul.addr %s342, 2
        %s344 = smul.addr %s343, 8
        %s345 = scalar_lea.vmem %s2, %s344
        %p346 = pneg %p88
        %p347 = pneg %p85
        %p348 = scmp.lt.s32.totalorder %s25, 3
        %s349 = scalar_select %p348, %s25, 3
        %s350 = smul.addr %s349, 2
        %s351 = smul.addr %s350, 8
        %s352 = scalar_lea.vmem %s3, %s351
        %p353 = pneg %p114
        %p354 = pneg %p111
        %p355 = pneg %p135
        %p356 = pneg %p132
        %p357 = pneg %p156
        %p358 = pneg %p153
        %p359 = pneg %p177
        %p360 = pneg %p174
        %p361 = pneg %p198
        %p362 = pneg %p195
        %p363 = pneg %p224
        %p364 = pneg %p221
        %s365 = sand.u32 %s211, 1
        %s366 = scalar_lea.sflag [#allocation5], %s365
        %s367 = sand.u32 %s211, 1
        %s368 = smul.addr %s367, 16
        %s369 = scalar_lea.vmem [#allocation11], %s368
        %p370 = scmp.lt.s32.totalorder %s25, 3
        %s371 = scalar_select %p370, %s25, 3
        %s372 = smul.addr %s371, 2
        %s373 = smul.addr %s372, 8
        %s374 = scalar_lea.vmem %s2, %s373
        %p375 = scmp.lt.s32.totalorder %s25, 3
        %s376 = scalar_select %p375, %s25, 3
        %s377 = smul.addr %s376, 2
        %s378 = smul.addr %s377, 8
        %s379 = scalar_lea.vmem %s3, %s378
        %p380 = scmp.eq.s32.totalorder %s25, 0
        // Predicated region
        $region69: #{tpu_custom_call.1} parent=51 // pred_check
          %p381 = pneg %p380
        $region70: #{tpu_custom_call.1} parent=51 // pred_check_branch
          %383 = sbr.rel (%p381) target = $region72
        $region71: #{tpu_custom_call.1} parent=51 // pred_region
          %v384 = vld [vmem:[#allocation7] sm:$0xff]
          %v385 = vld [vmem:[#allocation7 + $0x8] sm:$0xff]
          %vm386 = vcmask 261120
          %387 = vst.msk [vmem:[#allocation2] sm:$0xff] %vm386, %v384
          %388 = vst.msk [vmem:[#allocation2 + $0x8] sm:$0xff] %vm386, %v385
        $region72: #{tpu_custom_call.1} parent=51 // pred_fallthru
          _
        %v389 = vld [vmem:[#allocation2] sm:$0xff]
        %v390 = vld [vmem:[#allocation2 + $0x8] sm:$0xff]
        %s391 = sld [smem:[#allocation3 + %s25]]
        %v392 = vld [vmem:[#allocation8] sm:$0xff]
        %v393 = vld [vmem:[#allocation8 + $0x8] sm:$0xff]
        %vm394 = vcmask 130048
        %v396 = vsel %vm394, %v392, 0
        %v399 = vsel %vm394, %v393, 0
        %401 = vmatprep.subr.mxu0 0.0
        %402 = vmatpush1.msra.mxu0 %v389
        %403 = vmatprep.subr.mxu0 0.0
        %404 = vmatpush1.msra.mxu0 %v390
        %405 = vmatprep.subr.mxu0 0.0
        %406 = vmatpush1.msra.mxu0 0.0
        %407 = vmatprep.subr.mxu0 0.0
        %408 = vmatpush1.msra.mxu0 0.0
        %409 = vmatprep.subr.mxu0 0.0
        %410 = vmatpush1.msra.mxu0 0.0
        %411 = vmatprep.subr.mxu0 0.0
        %412 = vmatpush1.msra.mxu0 0.0
        %413 = vmatprep.subr.mxu0 0.0
        %414 = vmatpush1.msra.mxu0 0.0
        %415 = vmatprep.subr.mxu0 0.0
        %416 = vmatpush1.msra.mxu0 0.0
        %417 = vmatprep.subr.mxu0 0.0
        %418 = vmatpush1.msra.mxu0 0.0
        %419 = vmatprep.subr.mxu0 0.0
        %420 = vmatpush1.msra.mxu0 0.0
        %421 = vmatprep.subr.mxu0 0.0
        %422 = vmatpush1.msra.mxu0 0.0
        %423 = vmatprep.subr.mxu0 0.0
        %424 = vmatpush1.msra.mxu0 0.0
        %425 = vmatprep.subr.mxu0 0.0
        %426 = vmatpush1.msra.mxu0 0.0
        %427 = vmatprep.subr.mxu0 0.0
        %428 = vmatpush1.msra.mxu0 0.0
        %429 = vmatprep.subr.mxu0 0.0
        %430 = vmatpush1.msra.mxu0 0.0
        %431 = vmatprep.subr.mxu0 0.0
        %432 = vmatpush1.msra.mxu0 0.0
        %433 = vmatprep.subr.mxu0 0.0
        %434 = vmatpush1.msra.mxu0 0.0
        %435 = vmatprep.subr.mxu0 0.0
        %436 = vmatpush1.msra.mxu0 0.0
        %437 = vmatprep.subr.mxu0 0.0
        %438 = vmatpush1.msra.mxu0 0.0
        %439 = vmatprep.subr.mxu0 0.0
        %440 = vmatpush1.msra.mxu0 0.0
        %441 = vmatprep.subr.mxu0 0.0
        %442 = vmatpush1.msra.mxu0 0.0
        %443 = vmatprep.subr.mxu0 0.0
        %444 = vmatpush1.msra.mxu0 0.0
        %445 = vmatprep.subr.mxu0 0.0
        %446 = vmatpush1.msra.mxu0 0.0
        %447 = vmatprep.subr.mxu0 0.0
        %448 = vmatpush1.msra.mxu0 0.0
        %449 = vmatprep.subr.mxu0 0.0
        %450 = vmatpush1.msra.mxu0 0.0
        %451 = vmatprep.subr.mxu0 0.0
        %452 = vmatpush1.msra.mxu0 0.0
        %453 = vmatprep.subr.mxu0 0.0
        %454 = vmatpush1.msra.mxu0 0.0
        %455 = vmatprep.subr.mxu0 0.0
        %456 = vmatpush1.msra.mxu0 0.0
        %457 = vmatprep.subr.mxu0 0.0
        %458 = vmatpush1.msra.mxu0 0.0
        %459 = vmatprep.subr.mxu0 0.0
        %460 = vmatpush1.msra.mxu0 0.0
        %461 = vmatprep.subr.mxu0 0.0
        %462 = vmatpush1.msra.mxu0 0.0
        %463 = vmatprep.subr.mxu0 0.0
        %464 = vmatpush1.msra.mxu0 0.0
        %465 = vmatprep.mubr.f32.mxu0 0.0
        %466 = vmatmul.mubr.f32.gmra.mrb[0].mxu0 %v396
        %v467 = vpop.f32.mrb[0].mxu0
        %v468 = vadd.f32 0.0, %v467
        %v469 = vpop.f32.mrb[0].mxu0
        %470 = vmatprep.mubr.f32.mxu0 0.0
        %471 = vmatmul.mubr.f32.gmra.mrb[0].mxu0 %v399
        %v472 = vpop.f32.mrb[0].mxu0
        %v473 = vadd.f32 0.0, %v472
        %v474 = vpop.f32.mrb[0].mxu0
        %475 = vdwg.mxu0
        %s476 = scalar_lea.vmem [#allocation8], 16
        %v477 = vld [vmem:[%s476] sm:$0xff]
        %v478 = vld [vmem:[%s476 + $0x8] sm:$0xff]
        %v480 = vsel %vm394, %v477, 0
        %v483 = vsel %vm394, %v478, 0
        %485 = vmatprep.subr.mxu0 0.0
        %486 = vmatpush1.msra.mxu0 %v389
        %487 = vmatprep.subr.mxu0 0.0
        %488 = vmatpush1.msra.mxu0 %v390
        %489 = vmatprep.subr.mxu0 0.0
        %490 = vmatpush1.msra.mxu0 0.0
        %491 = vmatprep.subr.mxu0 0.0
        %492 = vmatpush1.msra.mxu0 0.0
        %493 = vmatprep.subr.mxu0 0.0
        %494 = vmatpush1.msra.mxu0 0.0
        %495 = vmatprep.subr.mxu0 0.0
        %496 = vmatpush1.msra.mxu0 0.0
        %497 = vmatprep.subr.mxu0 0.0
        %498 = vmatpush1.msra.mxu0 0.0
        %499 = vmatprep.subr.mxu0 0.0
        %500 = vmatpush1.msra.mxu0 0.0
        %501 = vmatprep.subr.mxu0 0.0
        %502 = vmatpush1.msra.mxu0 0.0
        %503 = vmatprep.subr.mxu0 0.0
        %504 = vmatpush1.msra.mxu0 0.0
        %505 = vmatprep.subr.mxu0 0.0
        %506 = vmatpush1.msra.mxu0 0.0
        %507 = vmatprep.subr.mxu0 0.0
        %508 = vmatpush1.msra.mxu0 0.0
        %509 = vmatprep.subr.mxu0 0.0
        %510 = vmatpush1.msra.mxu0 0.0
        %511 = vmatprep.subr.mxu0 0.0
        %512 = vmatpush1.msra.mxu0 0.0
        %513 = vmatprep.subr.mxu0 0.0
        %514 = vmatpush1.msra.mxu0 0.0
        %515 = vmatprep.subr.mxu0 0.0
        %516 = vmatpush1.msra.mxu0 0.0
        %517 = vmatprep.subr.mxu0 0.0
        %518 = vmatpush1.msra.mxu0 0.0
        %519 = vmatprep.subr.mxu0 0.0
        %520 = vmatpush1.msra.mxu0 0.0
        %521 = vmatprep.subr.mxu0 0.0
        %522 = vmatpush1.msra.mxu0 0.0
        %523 = vmatprep.subr.mxu0 0.0
        %524 = vmatpush1.msra.mxu0 0.0
        %525 = vmatprep.subr.mxu0 0.0
        %526 = vmatpush1.msra.mxu0 0.0
        %527 = vmatprep.subr.mxu0 0.0
        %528 = vmatpush1.msra.mxu0 0.0
        %529 = vmatprep.subr.mxu0 0.0
        %530 = vmatpush1.msra.mxu0 0.0
        %531 = vmatprep.subr.mxu0 0.0
        %532 = vmatpush1.msra.mxu0 0.0
        %533 = vmatprep.subr.mxu0 0.0
        %534 = vmatpush1.msra.mxu0 0.0
        %535 = vmatprep.subr.mxu0 0.0
        %536 = vmatpush1.msra.mxu0 0.0
        %537 = vmatprep.subr.mxu0 0.0
        %538 = vmatpush1.msra.mxu0 0.0
        %539 = vmatprep.subr.mxu0 0.0
        %540 = vmatpush1.msra.mxu0 0.0
        %541 = vmatprep.subr.mxu0 0.0
        %542 = vmatpush1.msra.mxu0 0.0
        %543 = vmatprep.subr.mxu0 0.0
        %544 = vmatpush1.msra.mxu0 0.0
        %545 = vmatprep.subr.mxu0 0.0
        %546 = vmatpush1.msra.mxu0 0.0
        %547 = vmatprep.subr.mxu0 0.0
        %548 = vmatpush1.msra.mxu0 0.0
        %549 = vmatprep.mubr.f32.mxu0 0.0
        %550 = vmatmul.mubr.f32.gmra.mrb[0].mxu0 %v480
        %v551 = vpop.f32.mrb[0].mxu0
        %v552 = vadd.f32 0.0, %v551
        %v553 = vpop.f32.mrb[0].mxu0
        %554 = vmatprep.mubr.f32.mxu0 0.0
        %555 = vmatmul.mubr.f32.gmra.mrb[0].mxu0 %v483
        %v556 = vpop.f32.mrb[0].mxu0
        %v557 = vadd.f32 0.0, %v556
        %v558 = vpop.f32.mrb[0].mxu0
        %559 = vdwg.mxu0
        %s560 = scalar_lea.vmem [#allocation8], 32
        %v561 = vld [vmem:[%s560] sm:$0xff]
        %v562 = vld [vmem:[%s560 + $0x8] sm:$0xff]
        %v564 = vsel %vm394, %v561, 0
        %v567 = vsel %vm394, %v562, 0
        %569 = vmatprep.subr.mxu0 0.0
        %570 = vmatpush1.msra.mxu0 %v389
        %571 = vmatprep.subr.mxu0 0.0
        %572 = vmatpush1.msra.mxu0 %v390
        %573 = vmatprep.subr.mxu0 0.0
        %574 = vmatpush1.msra.mxu0 0.0
        %575 = vmatprep.subr.mxu0 0.0
        %576 = vmatpush1.msra.mxu0 0.0
        %577 = vmatprep.subr.mxu0 0.0
        %578 = vmatpush1.msra.mxu0 0.0
        %579 = vmatprep.subr.mxu0 0.0
        %580 = vmatpush1.msra.mxu0 0.0
        %581 = vmatprep.subr.mxu0 0.0
        %582 = vmatpush1.msra.mxu0 0.0
        %583 = vmatprep.subr.mxu0 0.0
        %584 = vmatpush1.msra.mxu0 0.0
        %585 = vmatprep.subr.mxu0 0.0
        %586 = vmatpush1.msra.mxu0 0.0
        %587 = vmatprep.subr.mxu0 0.0
        %588 = vmatpush1.msra.mxu0 0.0
        %589 = vmatprep.subr.mxu0 0.0
        %590 = vmatpush1.msra.mxu0 0.0
        %591 = vmatprep.subr.mxu0 0.0
        %592 = vmatpush1.msra.mxu0 0.0
        %593 = vmatprep.subr.mxu0 0.0
        %594 = vmatpush1.msra.mxu0 0.0
        %595 = vmatprep.subr.mxu0 0.0
        %596 = vmatpush1.msra.mxu0 0.0
        %597 = vmatprep.subr.mxu0 0.0
        %598 = vmatpush1.msra.mxu0 0.0
        %599 = vmatprep.subr.mxu0 0.0
        %600 = vmatpush1.msra.mxu0 0.0
        %601 = vmatprep.subr.mxu0 0.0
        %602 = vmatpush1.msra.mxu0 0.0
        %603 = vmatprep.subr.mxu0 0.0
        %604 = vmatpush1.msra.mxu0 0.0
        %605 = vmatprep.subr.mxu0 0.0
        %606 = vmatpush1.msra.mxu0 0.0
        %607 = vmatprep.subr.mxu0 0.0
        %608 = vmatpush1.msra.mxu0 0.0
        %609 = vmatprep.subr.mxu0 0.0
        %610 = vmatpush1.msra.mxu0 0.0
        %611 = vmatprep.subr.mxu0 0.0
        %612 = vmatpush1.msra.mxu0 0.0
        %613 = vmatprep.subr.mxu0 0.0
        %614 = vmatpush1.msra.mxu0 0.0
        %615 = vmatprep.subr.mxu0 0.0
        %616 = vmatpush1.msra.mxu0 0.0
        %617 = vmatprep.subr.mxu0 0.0
        %618 = vmatpush1.msra.mxu0 0.0
        %619 = vmatprep.subr.mxu0 0.0
        %620 = vmatpush1.msra.mxu0 0.0
        %621 = vmatprep.subr.mxu0 0.0
        %622 = vmatpush1.msra.mxu0 0.0
        %623 = vmatprep.subr.mxu0 0.0
        %624 = vmatpush1.msra.mxu0 0.0
        %625 = vmatprep.subr.mxu0 0.0
        %626 = vmatpush1.msra.mxu0 0.0
        %627 = vmatprep.subr.mxu0 0.0
        %628 = vmatpush1.msra.mxu0 0.0
        %629 = vmatprep.subr.mxu0 0.0
        %630 = vmatpush1.msra.mxu0 0.0
        %631 = vmatprep.subr.mxu0 0.0
        %632 = vmatpush1.msra.mxu0 0.0
        %633 = vmatprep.mubr.f32.mxu0 0.0
        %634 = vmatmul.mubr.f32.gmra.mrb[0].mxu0 %v564
        %v635 = vpop.f32.mrb[0].mxu0
        %v636 = vadd.f32 0.0, %v635
        %v637 = vpop.f32.mrb[0].mxu0
        %638 = vmatprep.mubr.f32.mxu0 0.0
        %639 = vmatmul.mubr.f32.gmra.mrb[0].mxu0 %v567
        %v640 = vpop.f32.mrb[0].mxu0
        %v641 = vadd.f32 0.0, %v640
        %v642 = vpop.f32.mrb[0].mxu0
        %643 = vdwg.mxu0
        %646 = vrot.lane.b32.xlu0 %v468, 32
        %v647 = vpop.permute.xlu0 %646
        %648 = vrot.lane.b32.xlu0 %v473, 32
        %v649 = vpop.permute.xlu0 %648
        %654 = vrot.lane.b32.xlu0 %v552, 64
        %v655 = vpop.permute.xlu0 %654
        %656 = vrot.lane.b32.xlu0 %v557, 64
        %v657 = vpop.permute.xlu0 %656
        %662 = vrot.lane.b32.xlu0 %v636, 96
        %v663 = vpop.permute.xlu0 %662
        %664 = vrot.lane.b32.xlu0 %v641, 96
        %v665 = vpop.permute.xlu0 %664
        %vm668 = vcmask 261120
        %v669 = vsel %vm668, %v389, %v647
        %v670 = vsel %vm668, %v390, %v649
        %vm671 = vcmask 523264
        %v672 = vsel %vm671, %v669, %v655
        %v673 = vsel %vm671, %v670, %v657
        %vm674 = vcmask 785408
        %v675 = vsel %vm674, %v672, %v663
        %v676 = vsel %vm674, %v673, %v665
        %v677 = vld [vmem:[%s5] sm:$0xff]
        %v678 = vld [vmem:[%s5 + $0x8] sm:$0xff]
        %v679 = vld [vmem:[%s5 + $0x10] sm:$0xff]
        %v680 = vld [vmem:[%s5 + $0x18] sm:$0xff]
        %v681 = vld [vmem:[%s5 + $0x20] sm:$0xff]
        %v682 = vld [vmem:[%s5 + $0x28] sm:$0xff]
        %v683 = vld [vmem:[%s5 + $0x30] sm:$0xff]
        %v684 = vld [vmem:[%s5 + $0x38] sm:$0xff]
        %v685 = vld [vmem:[%s5 + $0x40] sm:$0xff]
        %v686 = vld [vmem:[%s5 + $0x48] sm:$0xff]
        %v687 = vld [vmem:[%s5 + $0x50] sm:$0xff]
        %v688 = vld [vmem:[%s5 + $0x58] sm:$0xff]
        %v689 = vld [vmem:[%s5 + $0x60] sm:$0xff]
        %v690 = vld [vmem:[%s5 + $0x68] sm:$0xff]
        %v691 = vld [vmem:[%s5 + $0x70] sm:$0xff]
        %v692 = vld [vmem:[%s5 + $0x78] sm:$0xff]
        %693 = vmatprep.subr.mxu0 0.0
        %694 = vmatpush1.msra.mxu0 %v677
        %695 = vmatprep.subr.mxu0 0.0
        %696 = vmatpush1.msra.mxu0 %v678
        %697 = vmatprep.subr.mxu0 0.0
        %698 = vmatpush1.msra.mxu0 %v679
        %699 = vmatprep.subr.mxu0 0.0
        %700 = vmatpush1.msra.mxu0 %v680
        %701 = vmatprep.subr.mxu0 0.0
        %702 = vmatpush1.msra.mxu0 %v681
        %703 = vmatprep.subr.mxu0 0.0
        %704 = vmatpush1.msra.mxu0 %v682
        %705 = vmatprep.subr.mxu0 0.0
        %706 = vmatpush1.msra.mxu0 %v683
        %707 = vmatprep.subr.mxu0 0.0
        %708 = vmatpush1.msra.mxu0 %v684
        %709 = vmatprep.subr.mxu0 0.0
        %710 = vmatpush1.msra.mxu0 %v685
        %711 = vmatprep.subr.mxu0 0.0
        %712 = vmatpush1.msra.mxu0 %v686
        %713 = vmatprep.subr.mxu0 0.0
        %714 = vmatpush1.msra.mxu0 %v687
        %715 = vmatprep.subr.mxu0 0.0
        %716 = vmatpush1.msra.mxu0 %v688
        %717 = vmatprep.subr.mxu0 0.0
        %718 = vmatpush1.msra.mxu0 %v689
        %719 = vmatprep.subr.mxu0 0.0
        %720 = vmatpush1.msra.mxu0 %v690
        %721 = vmatprep.subr.mxu0 0.0
        %722 = vmatpush1.msra.mxu0 %v691
        %723 = vmatprep.subr.mxu0 0.0
        %724 = vmatpush1.msra.mxu0 %v692
        %725 = vmatprep.subr.mxu0 0.0
        %726 = vmatpush1.msra.mxu0 0.0
        %727 = vmatprep.subr.mxu0 0.0
        %728 = vmatpush1.msra.mxu0 0.0
        %729 = vmatprep.subr.mxu0 0.0
        %730 = vmatpush1.msra.mxu0 0.0
        %731 = vmatprep.subr.mxu0 0.0
        %732 = vmatpush1.msra.mxu0 0.0
        %733 = vmatprep.subr.mxu0 0.0
        %734 = vmatpush1.msra.mxu0 0.0
        %735 = vmatprep.subr.mxu0 0.0
        %736 = vmatpush1.msra.mxu0 0.0
        %737 = vmatprep.subr.mxu0 0.0
        %738 = vmatpush1.msra.mxu0 0.0
        %739 = vmatprep.subr.mxu0 0.0
        %740 = vmatpush1.msra.mxu0 0.0
        %741 = vmatprep.subr.mxu0 0.0
        %742 = vmatpush1.msra.mxu0 0.0
        %743 = vmatprep.subr.mxu0 0.0
        %744 = vmatpush1.msra.mxu0 0.0
        %745 = vmatprep.subr.mxu0 0.0
        %746 = vmatpush1.msra.mxu0 0.0
        %747 = vmatprep.subr.mxu0 0.0
        %748 = vmatpush1.msra.mxu0 0.0
        %749 = vmatprep.subr.mxu0 0.0
        %750 = vmatpush1.msra.mxu0 0.0
        %751 = vmatprep.subr.mxu0 0.0
        %752 = vmatpush1.msra.mxu0 0.0
        %753 = vmatprep.subr.mxu0 0.0
        %754 = vmatpush1.msra.mxu0 0.0
        %755 = vmatprep.subr.mxu0 0.0
        %756 = vmatpush1.msra.mxu0 0.0
        %757 = vmatprep.mubr.f32.mxu0 0.0
        %758 = vmatmul.mubr.f32.gmra.mrb[0].mxu0 %v675
        %v759 = vpop.f32.mrb[0].mxu0
        %v760 = vadd.f32 0.0, %v759
        %v761 = vpop.f32.mrb[0].mxu0
        %762 = vmatprep.mubr.f32.mxu0 0.0
        %763 = vmatmul.mubr.f32.gmra.mrb[0].mxu0 %v676
        %v764 = vpop.f32.mrb[0].mxu0
        %v765 = vadd.f32 0.0, %v764
        %v766 = vpop.f32.mrb[0].mxu0
        %767 = vdwg.mxu0
        %v768 = vtanh.pop %v760
        %v769 = vtanh.pop %v765
        %v770 = vstv %s391
        %v771 = vmul.f32 %v770, %v768
        %v772 = vmul.f32 %v770, %v769
        %v773 = vadd.f32 %v389, %v771
        %v774 = vadd.f32 %v390, %v772
        %v775 = vld [vmem:[%s6] sm:$0xff]
        %v776 = vld [vmem:[%s6 + $0x8] sm:$0xff]
        %v777 = vld [vmem:[%s6 + $0x10] sm:$0xff]
        %v778 = vld [vmem:[%s6 + $0x18] sm:$0xff]
        %v779 = vld [vmem:[%s374] sm:$0xff]
        %v780 = vld [vmem:[%s374 + $0x8] sm:$0xff]
        %v782 = vsel %vm668, %v773, 0
        %v785 = vsel %vm668, %v774, 0
        %787 = vmatprep.subr.mxu0 0.0
        %788 = vmatpush1.msra.mxu0 %v775
        %789 = vmatprep.subr.mxu0 0.0
        %790 = vmatpush1.msra.mxu0 %v776
        %791 = vmatprep.subr.mxu0 0.0
        %792 = vmatpush1.msra.mxu0 %v777
        %793 = vmatprep.subr.mxu0 0.0
        %794 = vmatpush1.msra.mxu0 %v778
        %795 = vmatprep.subr.mxu0 0.0
        %796 = vmatpush1.msra.mxu0 0.0
        %797 = vmatprep.subr.mxu0 0.0
        %798 = vmatpush1.msra.mxu0 0.0
        %799 = vmatprep.subr.mxu0 0.0
        %800 = vmatpush1.msra.mxu0 0.0
        %801 = vmatprep.subr.mxu0 0.0
        %802 = vmatpush1.msra.mxu0 0.0
        %803 = vmatprep.subr.mxu0 0.0
        %804 = vmatpush1.msra.mxu0 0.0
        %805 = vmatprep.subr.mxu0 0.0
        %806 = vmatpush1.msra.mxu0 0.0
        %807 = vmatprep.subr.mxu0 0.0
        %808 = vmatpush1.msra.mxu0 0.0
        %809 = vmatprep.subr.mxu0 0.0
        %810 = vmatpush1.msra.mxu0 0.0
        %811 = vmatprep.subr.mxu0 0.0
        %812 = vmatpush1.msra.mxu0 0.0
        %813 = vmatprep.subr.mxu0 0.0
        %814 = vmatpush1.msra.mxu0 0.0
        %815 = vmatprep.subr.mxu0 0.0
        %816 = vmatpush1.msra.mxu0 0.0
        %817 = vmatprep.subr.mxu0 0.0
        %818 = vmatpush1.msra.mxu0 0.0
        %819 = vmatprep.subr.mxu0 0.0
        %820 = vmatpush1.msra.mxu0 0.0
        %821 = vmatprep.subr.mxu0 0.0
        %822 = vmatpush1.msra.mxu0 0.0
        %823 = vmatprep.subr.mxu0 0.0
        %824 = vmatpush1.msra.mxu0 0.0
        %825 = vmatprep.subr.mxu0 0.0
        %826 = vmatpush1.msra.mxu0 0.0
        %827 = vmatprep.subr.mxu0 0.0
        %828 = vmatpush1.msra.mxu0 0.0
        %829 = vmatprep.subr.mxu0 0.0
        %830 = vmatpush1.msra.mxu0 0.0
        %831 = vmatprep.subr.mxu0 0.0
        %832 = vmatpush1.msra.mxu0 0.0
        %833 = vmatprep.subr.mxu0 0.0
        %834 = vmatpush1.msra.mxu0 0.0
        %835 = vmatprep.subr.mxu0 0.0
        %836 = vmatpush1.msra.mxu0 0.0
        %837 = vmatprep.subr.mxu0 0.0
        %838 = vmatpush1.msra.mxu0 0.0
        %839 = vmatprep.subr.mxu0 0.0
        %840 = vmatpush1.msra.mxu0 0.0
        %841 = vmatprep.subr.mxu0 0.0
        %842 = vmatpush1.msra.mxu0 0.0
        %843 = vmatprep.subr.mxu0 0.0
        %844 = vmatpush1.msra.mxu0 0.0
        %845 = vmatprep.subr.mxu0 0.0
        %846 = vmatpush1.msra.mxu0 0.0
        %847 = vmatprep.subr.mxu0 0.0
        %848 = vmatpush1.msra.mxu0 0.0
        %849 = vmatprep.subr.mxu0 0.0
        %850 = vmatpush1.msra.mxu0 0.0
        %851 = vmatprep.mubr.f32.mxu0 0.0
        %852 = vmatmul.mubr.f32.gmra.mrb[0].mxu0 %v782
        %v853 = vpop.f32.mrb[0].mxu0
        %v854 = vadd.f32 %v779, %v853
        %v855 = vpop.f32.mrb[0].mxu0
        %856 = vmatprep.mubr.f32.mxu0 0.0
        %857 = vmatmul.mubr.f32.gmra.mrb[0].mxu0 %v785
        %v858 = vpop.f32.mrb[0].mxu0
        %v859 = vadd.f32 %v780, %v858
        %v860 = vpop.f32.mrb[0].mxu0
        %861 = vdwg.mxu0
        %v862 = vxor.u32 %v854, 2147483648
        %v863 = vxor.u32 %v859, 2147483648
        %v864 = vmul.f32 %v862, 1.442695
        %v865 = vpow.pop %v864
        %v866 = vmul.f32 %v863, 1.442695
        %v867 = vpow.pop %v866
        %v868 = vadd.f32 %v865, 1.0
        %v869 = vadd.f32 %v867, 1.0
        %v870 = vrcp.pop %v868
        %v871 = vmul.f32 1.0, %v870
        %v872 = vrcp.pop %v869
        %v873 = vmul.f32 1.0, %v872
        %v874 = vmul.f32 %v773, %v871
        %v875 = vmul.f32 %v774, %v873
        %v876 = vld [vmem:[#allocation10] sm:$0xff]
        %v877 = vld [vmem:[#allocation10 + $0x8] sm:$0xff]
        %v878 = vld [vmem:[#allocation10 + $0x10] sm:$0xff]
        %v879 = vld [vmem:[#allocation10 + $0x18] sm:$0xff]
        %v880 = vld [vmem:[%s379] sm:$0xff]
        %v881 = vld [vmem:[%s379 + $0x8] sm:$0xff]
        %v883 = vsel %vm668, %v874, 0
        %v886 = vsel %vm668, %v875, 0
        %888 = vmatprep.subr.mxu0 0.0
        %889 = vmatpush1.msra.mxu0 %v876
        %890 = vmatprep.subr.mxu0 0.0
        %891 = vmatpush1.msra.mxu0 %v877
        %892 = vmatprep.subr.mxu0 0.0
        %893 = vmatpush1.msra.mxu0 %v878
        %894 = vmatprep.subr.mxu0 0.0
        %895 = vmatpush1.msra.mxu0 %v879
        %896 = vmatprep.subr.mxu0 0.0
        %897 = vmatpush1.msra.mxu0 0.0
        %898 = vmatprep.subr.mxu0 0.0
        %899 = vmatpush1.msra.mxu0 0.0
        %900 = vmatprep.subr.mxu0 0.0
        %901 = vmatpush1.msra.mxu0 0.0
        %902 = vmatprep.subr.mxu0 0.0
        %903 = vmatpush1.msra.mxu0 0.0
        %904 = vmatprep.subr.mxu0 0.0
        %905 = vmatpush1.msra.mxu0 0.0
        %906 = vmatprep.subr.mxu0 0.0
        %907 = vmatpush1.msra.mxu0 0.0
        %908 = vmatprep.subr.mxu0 0.0
        %909 = vmatpush1.msra.mxu0 0.0
        %910 = vmatprep.subr.mxu0 0.0
        %911 = vmatpush1.msra.mxu0 0.0
        %912 = vmatprep.subr.mxu0 0.0
        %913 = vmatpush1.msra.mxu0 0.0
        %914 = vmatprep.subr.mxu0 0.0
        %915 = vmatpush1.msra.mxu0 0.0
        %916 = vmatprep.subr.mxu0 0.0
        %917 = vmatpush1.msra.mxu0 0.0
        %918 = vmatprep.subr.mxu0 0.0
        %919 = vmatpush1.msra.mxu0 0.0
        %920 = vmatprep.subr.mxu0 0.0
        %921 = vmatpush1.msra.mxu0 0.0
        %922 = vmatprep.subr.mxu0 0.0
        %923 = vmatpush1.msra.mxu0 0.0
        %924 = vmatprep.subr.mxu0 0.0
        %925 = vmatpush1.msra.mxu0 0.0
        %926 = vmatprep.subr.mxu0 0.0
        %927 = vmatpush1.msra.mxu0 0.0
        %928 = vmatprep.subr.mxu0 0.0
        %929 = vmatpush1.msra.mxu0 0.0
        %930 = vmatprep.subr.mxu0 0.0
        %931 = vmatpush1.msra.mxu0 0.0
        %932 = vmatprep.subr.mxu0 0.0
        %933 = vmatpush1.msra.mxu0 0.0
        %934 = vmatprep.subr.mxu0 0.0
        %935 = vmatpush1.msra.mxu0 0.0
        %936 = vmatprep.subr.mxu0 0.0
        %937 = vmatpush1.msra.mxu0 0.0
        %938 = vmatprep.subr.mxu0 0.0
        %939 = vmatpush1.msra.mxu0 0.0
        %940 = vmatprep.subr.mxu0 0.0
        %941 = vmatpush1.msra.mxu0 0.0
        %942 = vmatprep.subr.mxu0 0.0
        %943 = vmatpush1.msra.mxu0 0.0
        %944 = vmatprep.subr.mxu0 0.0
        %945 = vmatpush1.msra.mxu0 0.0
        %946 = vmatprep.subr.mxu0 0.0
        %947 = vmatpush1.msra.mxu0 0.0
        %948 = vmatprep.subr.mxu0 0.0
        %949 = vmatpush1.msra.mxu0 0.0
        %950 = vmatprep.subr.mxu0 0.0
        %951 = vmatpush1.msra.mxu0 0.0
        %952 = vmatprep.mubr.f32.mxu0 0.0
        %953 = vmatmul.mubr.f32.gmra.mrb[0].mxu0 %v883
        %v954 = vpop.f32.mrb[0].mxu0
        %v955 = vadd.f32 %v880, %v954
        %v956 = vpop.f32.mrb[0].mxu0
        %957 = vmatprep.mubr.f32.mxu0 0.0
        %958 = vmatmul.mubr.f32.gmra.mrb[0].mxu0 %v886
        %v959 = vpop.f32.mrb[0].mxu0
        %v960 = vadd.f32 %v881, %v959
        %v961 = vpop.f32.mrb[0].mxu0
        %962 = vdwg.mxu0
        %v963 = vtanh.pop %v955
        %v964 = vtanh.pop %v960
        %965 = vrot.lane.b32.xlu0 %v773, 32
        %v966 = vpop.permute.xlu0 %965
        %967 = vrot.lane.b32.xlu0 %v774, 32
        %v968 = vpop.permute.xlu0 %967
        %v971 = vmul.f32 %v871, %v966
        %v972 = vmul.f32 %v873, %v968
        %v973 = vsub.f32 1.0, %v871
        %v974 = vsub.f32 1.0, %v873
        %977 = vrot.lane.b32.xlu0 %v963, 32
        %v978 = vpop.permute.xlu0 %977
        %979 = vrot.lane.b32.xlu0 %v964, 32
        %v980 = vpop.permute.xlu0 %979
        %v983 = vmul.f32 %v973, %v978
        %v984 = vmul.f32 %v974, %v980
        %v985 = vadd.f32 %v971, %v983
        %v986 = vadd.f32 %v972, %v984
        %989 = vrot.lane.b32.xlu0 %v985, 96
        %v990 = vpop.permute.xlu0 %989
        %991 = vrot.lane.b32.xlu0 %v986, 96
        %v992 = vpop.permute.xlu0 %991
        %995 = vst.msk [vmem:[#allocation2] sm:$0xff] %vm668, %v990
        %996 = vst.msk [vmem:[#allocation2 + $0x8] sm:$0xff] %vm668, %v992
        %997 = vst.msk [vmem:[%s369] sm:$0xff] %vm668, %v990
        %998 = vst.msk [vmem:[%s369 + $0x8] sm:$0xff] %vm668, %v992
        %s999 = sand.u32 %s211, 1
        %s1000 = scalar_lea.sflag [#allocation5], %s999
        %s1001 = sand.u32 %s211, 1
        %s1002 = smul.addr %s1001, 16
        %s1003 = scalar_lea.vmem [#allocation11], %s1002
        // Predicated region
        $region73: #{tpu_custom_call.1} parent=51 // pred_check
          %p1004 = pneg %p221
        $region74: #{tpu_custom_call.1} parent=51 // pred_check_branch
          %1006 = sbr.rel (%p1004) target = $region76
        $region75: #{tpu_custom_call.1} parent=51 // pred_region
          %s1008 = ssub.s32 256, 256
          %1009 = vsyncadd %s1000, %s1008
          %s1010 = smul.addr %s25, 2
          %s1011 = smul.addr %s1010, 128
          %s1012 = scalar_lea.hbm %s8, %s1011
          %s1013 = sshll.u32 %s1003, 4
          %s1014 = int_to_ptr.vmem [resolvable:$true] %s1013
          %1019 = dma.vmem_to_hbm [thread:$0]  %s1014, 256, %s1012, %s1000, 128, 128, 8
        $region76: #{tpu_custom_call.1} parent=51 // pred_fallthru
          _
      $region52: #{tpu_custom_call.1} parent=5 // pred_fallthru
        _
      %p1020 = scmp.le.s32.totalorder 2, %s20
      // Predicated region
      $region77: #{tpu_custom_call.1} parent=5 // pred_check
        %p1021 = pneg %p1020
      $region78: #{tpu_custom_call.1} parent=5 // pred_check_branch
        %1023 = sbr.rel (%p1021) target = $region80
      $region79: #{tpu_custom_call.1} parent=5 // pred_region
        %s1024 = ssub.s32 %s20, 2
        // Predicated region
        $region81: #{tpu_custom_call.1} parent=79 // pred_check
          %p1025 = pneg %p227
        $region82: #{tpu_custom_call.1} parent=79 // pred_check_branch
          %1027 = sbr.rel (%p1025) target = $region84
        $region83: #{tpu_custom_call.1} parent=79 // pred_region
          %s1028 = sand.u32 %s212, 1
          %s1029 = scalar_lea.sflag [#allocation5], %s1028
          %s1030 = sand.u32 %s212, 1
          %s1031 = smul.addr %s1030, 16
          %s1032 = scalar_lea.vmem [#allocation11], %s1031
          %1033 = dma.done %s1029, 256
        $region84: #{tpu_custom_call.1} parent=79 // pred_fallthru
          _
      $region80: #{tpu_custom_call.1} parent=5 // pred_fallthru
        _
    $region6: #{tpu_custom_call.1} parent=1 // loop_footer
      %s24 = sadd.s32 1, %s20
    $region7: #{tpu_custom_call.1} parent=1 // loop_footer_branch
      %19 = sbr.rel target = $region3
    $region8: #{tpu_custom_call.1} parent=1 // loop_exit
      _
    %1034 = vsyncpa [#allocation4], 1
    %s1035 = scalar_lea.sflag [#allocation4], 1
    %1036 = vsyncpa %s1035, 1
    %1037 = vsyncpa [#allocation9], 1
    %1038 = vsyncpa [#allocation5], 1
    %s1039 = scalar_lea.sflag [#allocation5], 1
    %1040 = vsyncpa %s1039, 1
    %1041 = vsyncpa [#allocation6], 1
    %s1042 = scalar_lea.sflag [#allocation6], 1
    %1043 = vsyncpa %s1042, 1

</llo_original>
